<compile_context>
chip_gen: v5e
topology: v5e:2x2
jax: 0.10.0
libtpu: 0.0.40
codegen_flags: <defaults>
</compile_context>

<pallas_src>
import functools

import jax
import jax.numpy as jnp
from jax import lax
from jax.experimental import pallas as pl
from jax.experimental.pallas import tpu as pltpu

_MIN_EPS = 1e-10


def _round_up(x, m):
    return (x + m - 1) // m * m


def _kde_ce_kernel(xp_ref, xp2_ref, xst_ref, xs2_ref, st_ref, w_ref,
                   pred_ref, acc_ref, *, k_pad, min_eps, mxu_dtype, exp_dtype):
    j = pl.program_id(1)

    @pl.when(j == 0)
    def _init():
        acc_ref[...] = jnp.zeros_like(acc_ref)

    # cross' = (2/(d*h)) * Xp @ Xs^T (constant pre-folded into xp).  Plain
    # (tm, d) @ (d, tn) contraction -> lane-dense RHS, no transposed dot.
    cross = jnp.dot(xp_ref[...], xst_ref[...],
                    preferred_element_type=jnp.float32)               # (TM, TN)

    # exponent = -(||xp||^2 + ||xs||^2 - 2 xp.xs) / (d*h)  (constants folded).
    # On the bf16 path it can round slightly positive; harmless after norm.
    kij = jnp.exp((xp2_ref[...] + xs2_ref[...] + cross).astype(exp_dtype))

    # Y' = weights * one_hot(supp_target), built on-chip (padded support rows
    # carry weight 0, padded classes are never hit -> contribute exactly 0).
    tn = xst_ref.shape[1]
    class_ids = lax.broadcasted_iota(jnp.int32, (tn, k_pad), 1)
    yw = jnp.where(class_ids == st_ref[...], w_ref[...], 0.0)          # (TN, Kp)

    acc_ref[...] += jnp.dot(kij.astype(mxu_dtype), yw.astype(mxu_dtype),
                            preferred_element_type=jnp.float32)        # (TM, Kp)

    @pl.when(j == pl.num_programs(1) - 1)
    def _finalize():
        acc = acc_ref[...]
        # One-hot rows sum to their weight -> class-sum == weighted kernel
        # row-sum, so normalization is a (TM, 1) op.
        denom = jnp.maximum(jnp.sum(acc, axis=1, keepdims=True), min_eps)
        r = pl.reciprocal(denom, approx=True)       # EUP slot (cheap)
        r = r * (2.0 - denom * r)                   # Newton step 1
        r = r * (2.0 - denom * r)                   # Newton step 2 (~f32 exact)
        pred_ref[...] = (acc * r).astype(pred_ref.dtype)


def kde_cross_entropy_loss(supp_embed, supp_target, pred_embed, target, *,
                           nclass: int, h: float = 1.0, weights=None,
                           min_eps: float = _MIN_EPS,
                           compute_dtype=jnp.bfloat16,
                           exp_dtype=jnp.float32,
                           tile_m: int = 256, tile_n: int = 1024,
                           min_m_tiles: int = 1,
                           vmem_limit_bytes=None):
    """JAX/Pallas equivalent of KDECrossEntropyLoss.forward (eval_only=False).

    compute_dtype: dtype for both MXU matmuls (bf16 default; pass jnp.float32
      for reference-precision validation).  exp, norms and accumulation stay
      f32.  min_m_tiles=2 guarantees >= 2 query tiles so both v7x TensorCores
      get work when M is small (leave at 1 on single-TC v5e/v6e).
    """
    supp_embed = jnp.asarray(supp_embed, jnp.float32)
    pred_embed = jnp.asarray(pred_embed, jnp.float32)
    n, d = supp_embed.shape
    m, d_check = pred_embed.shape
    assert d == d_check
    k = int(nclass)
    k_pad = _round_up(max(k, 1), 128)   # lane-dense classes (padded cols stay 0)

    # Tile sizes: clamp & align to (8, 128).
    m8 = _round_up(m, 8)
    tm = min(_round_up(int(tile_m), 8), m8)
    if min_m_tiles > 1:
        tm = min(tm, max(8, _round_up(pl.cdiv(m8, int(min_m_tiles)), 8)))
    n128 = _round_up(n, 128)
    tn = min(_round_up(int(tile_n), 128), n128)
    m_pad = _round_up(m, tm)
    n_pad = _round_up(n, tn)

    scale = 1.0 / (float(d) * float(h))

    # Fold the RBF constants into the inputs (O(M*d)+O(N*d) wrapper work that
    # removes O(M*N) in-kernel multiplies):
    #   exponent = (-s)*||xp||^2 + (-s)*||xs||^2 + (2s)*(xp . xs),  s = 1/(d*h)
    xp2 = (-scale) * jnp.sum(pred_embed * pred_embed, axis=1, keepdims=True)
    xs2 = (-scale) * jnp.sum(supp_embed * supp_embed, axis=1)[None, :]
    xp = ((2.0 * scale) * pred_embed).astype(compute_dtype)           # (M, d)
    xst = supp_embed.T.astype(compute_dtype)                          # (d, N)

    if weights is None:
        w = jnp.ones((n,), jnp.float32)
    else:
        w = jnp.broadcast_to(jnp.asarray(weights, jnp.float32), (n,))
    st = jnp.asarray(supp_target, jnp.int32)

    # Zero-pad to tile multiples (padded support columns get weight 0, so they
    # contribute nothing to numerator or denominator).
    xp = jnp.pad(xp, ((0, m_pad - m), (0, 0)))
    xp2 = jnp.pad(xp2, ((0, m_pad - m), (0, 0)))
    xst = jnp.pad(xst, ((0, 0), (0, n_pad - n)))
    xs2 = jnp.pad(xs2, ((0, 0), (0, n_pad - n)))
    st_col = jnp.pad(st[:, None], ((0, n_pad - n), (0, 0)))
    w_col = jnp.pad(w[:, None], ((0, n_pad - n), (0, 0)))

    grid = (m_pad // tm, n_pad // tn)
    kernel = functools.partial(_kde_ce_kernel, k_pad=k_pad,
                               min_eps=float(min_eps),
                               mxu_dtype=compute_dtype, exp_dtype=exp_dtype)

    pred_full = pl.pallas_call(
        kernel,
        out_shape=jax.ShapeDtypeStruct((m_pad, k_pad), jnp.float32),
        grid_spec=pltpu.PrefetchScalarGridSpec(
            num_scalar_prefetch=0,
            grid=grid,
            in_specs=[
                pl.BlockSpec((tm, d), lambda i, j: (i, 0)),     # (2s)*Xp tile
                pl.BlockSpec((tm, 1), lambda i, j: (i, 0)),     # -s*||xp||^2
                pl.BlockSpec((d, tn), lambda i, j: (0, j)),     # Xs^T (lane-dense)
                pl.BlockSpec((1, tn), lambda i, j: (0, j)),     # -s*||xs||^2
                pl.BlockSpec((tn, 1), lambda i, j: (j, 0)),     # support targets
                pl.BlockSpec((tn, 1), lambda i, j: (j, 0)),     # support weights
            ],
            out_specs=pl.BlockSpec((tm, k_pad), lambda i, j: (i, 0)),
            scratch_shapes=[pltpu.VMEM((tm, k_pad), jnp.float32)],
        ),
        compiler_params=pltpu.CompilerParams(
            dimension_semantics=("parallel", "arbitrary"),
            vmem_limit_bytes=vmem_limit_bytes),
    )(xp, xp2, xst, xs2, st_col, w_col)

    pred = pred_full[:m, :k]
    # LogLoss (mean NLL of the predicted class probability) finished in the
    # wrapper (removes a masked 1-lane store and the one-hot target stream).
    # TODO(synk): PyHealth LogLoss ignore_index filtering is not implemented.
    p_t = jnp.take_along_axis(pred, jnp.asarray(target, jnp.int32)[:, None],
                              axis=1)[:, 0]
    loss = jnp.mean(-jnp.log(jnp.maximum(p_t, min_eps)))
    return {"loss": loss, "extra_output": {"prediction": pred}}


def _reference(supp_embed, supp_target, pred_embed, target, *, nclass,
               h=1.0, weights=None, min_eps=_MIN_EPS):
    """Pure-JAX reference mirroring the PyTorch code."""
    n, d = supp_embed.shape
    diff = pred_embed[:, None, :] - supp_embed[None, :, :]
    dist2 = jnp.sum(diff * diff, axis=-1)
    kij = jnp.exp(dist2 / (-d * h))
    if weights is not None:
        kij = kij * jnp.asarray(weights, jnp.float32)[None, :]
    kij = kij / jnp.clip(jnp.sum(kij, axis=1, keepdims=True), min_eps)
    supp_y = jax.nn.one_hot(supp_target, nclass, dtype=jnp.float32)
    pred = kij @ supp_y
    p_t = jnp.take_along_axis(pred, target[:, None], axis=1)[:, 0]
    loss = jnp.mean(-jnp.log(jnp.clip(p_t, min_eps)))
    return pred, loss


if __name__ == "__main__":
    key = jax.random.PRNGKey(0)
    k1, k2, k3, k4, k5 = jax.random.split(key, 5)

    # Case 1: small shapes, single tile, explicit f32 path, strict tolerance.
    N, M, D, K = 64, 16, 32, 6
    supp_embed = jax.random.normal(k1, (N, D), jnp.float32)
    pred_embed = jax.random.normal(k2, (M, D), jnp.float32)
    supp_target = jax.random.randint(k3, (N,), 0, K, jnp.int32)
    target = jax.random.randint(k4, (M,), 0, K, jnp.int32)

    out = kde_cross_entropy_loss(supp_embed, supp_target, pred_embed, target,
                                 nclass=K, h=1.0, compute_dtype=jnp.float32)
    jax.block_until_ready(out["loss"])
    ref_pred, ref_loss = _reference(supp_embed, supp_target, pred_embed, target,
                                    nclass=K, h=1.0)
    assert jnp.allclose(out["extra_output"]["prediction"], ref_pred,
                        atol=1e-5, rtol=1e-5)
    assert jnp.allclose(out["loss"], ref_loss, atol=1e-5, rtol=1e-5)

    # Case 2: ragged shapes -> multi-tile grid + padding + per-support weights
    # + the v7x min_m_tiles knob; f32 path, strict tolerance.
    N2, M2, K2 = 200, 40, 5
    supp_embed2 = jax.random.normal(k5, (N2, D), jnp.float32)
    pred_embed2 = jax.random.normal(k2, (M2, D), jnp.float32)
    supp_target2 = jax.random.randint(k3, (N2,), 0, K2, jnp.int32)
    target2 = jax.random.randint(k4, (M2,), 0, K2, jnp.int32)
    w2 = jax.random.uniform(k1, (N2,), jnp.float32, 0.5, 1.5)
    out2 = kde_cross_entropy_loss(supp_embed2, supp_target2, pred_embed2,
                                  target2, nclass=K2, h=0.7, weights=w2,
                                  compute_dtype=jnp.float32,
                                  tile_m=16, tile_n=128, min_m_tiles=2)
    jax.block_until_ready(out2["loss"])
    ref_pred2, ref_loss2 = _reference(supp_embed2, supp_target2, pred_embed2,
                                      target2, nclass=K2, h=0.7, weights=w2)
    assert jnp.allclose(out2["extra_output"]["prediction"], ref_pred2,
                        atol=1e-5, rtol=1e-5)
    assert jnp.allclose(out2["loss"], ref_loss2, atol=1e-5, rtol=1e-5)

    # Case 3: default bf16 MXU path (f32 exp + f32 accumulation), relaxed tol.
    out3 = kde_cross_entropy_loss(supp_embed, supp_target, pred_embed, target,
                                  nclass=K, h=1.0)
    jax.block_until_ready(out3["loss"])
    assert jnp.allclose(out3["extra_output"]["prediction"], ref_pred,
                        atol=5e-2, rtol=5e-2)
    assert jnp.allclose(out3["loss"], ref_loss, atol=5e-2, rtol=5e-2)

    # Case 4: all kernel values underflow -> denominator clamp path.
    big = 100.0
    out4 = kde_cross_entropy_loss(big * supp_embed, supp_target,
                                  big * pred_embed, target,
                                  nclass=K, h=1.0, compute_dtype=jnp.float32)
    jax.block_until_ready(out4["loss"])
    ref_pred4, ref_loss4 = _reference(big * supp_embed, supp_target,
                                      big * pred_embed, target, nclass=K, h=1.0)
    assert jnp.allclose(out4["extra_output"]["prediction"], ref_pred4,
                        atol=1e-5, rtol=1e-5)
    assert jnp.allclose(out4["loss"], ref_loss4, atol=1e-5, rtol=1e-5)

    print("KERNEL_OK")
</pallas_src>

<mosaic_0001>
module attributes {stable_mosaic.version = 11 : i64} {
  func.func @_kde_ce_kernel(%arg0: i32, %arg1: i32, %arg2: memref<16x32xf32, #tpu.memory_space<vmem>>, %arg3: memref<16x1xf32, #tpu.memory_space<vmem>>, %arg4: memref<32x128xf32, #tpu.memory_space<vmem>>, %arg5: memref<1x128xf32, #tpu.memory_space<vmem>>, %arg6: memref<128x1xi32, #tpu.memory_space<vmem>>, %arg7: memref<128x1xf32, #tpu.memory_space<vmem>>, %arg8: memref<16x128xf32, #tpu.memory_space<vmem>>, %arg9: memref<16x128xf32, #tpu.memory_space<vmem>>) attributes {dimension_semantics = [#tpu.dimension_semantics<parallel>, #tpu.dimension_semantics<arbitrary>], iteration_bounds = array<i64: 1, 1>, scalar_prefetch = 0 : i64, scratch_operands = 1 : i64, tpu.core_type = #tpu.core_type<tc>, window_params = [{transform_indices = @transform_0, window_bounds = array<i64: 16, 32>}, {transform_indices = @transform_1, window_bounds = array<i64: 16, 1>}, {transform_indices = @transform_2, window_bounds = array<i64: 32, 128>}, {transform_indices = @transform_3, window_bounds = array<i64: 1, 128>}, {transform_indices = @transform_4, window_bounds = array<i64: 128, 1>}, {transform_indices = @transform_5, window_bounds = array<i64: 128, 1>}, {transform_indices = @transform_6, window_bounds = array<i64: 16, 128>}]} {
    %c0_i32 = arith.constant 0 : i32
    %0 = arith.cmpi eq, %arg1, %c0_i32 : i32
    %1 = arith.extui %0 : i1 to i32
    %c0_i32_0 = arith.constant 0 : i32
    %2 = arith.cmpi ne, %1, %c0_i32_0 : i32
    scf.if %2 {
      %cst_20 = arith.constant 0.000000e+00 : f32
      %29 = vector.broadcast %cst_20 : f32 to vector<16x128xf32>
      %c0_21 = arith.constant 0 : index
      %c0_22 = arith.constant 0 : index
      %30 = vector.load %arg9[%c0_21, %c0_22] : memref<16x128xf32, #tpu.memory_space<vmem>>, vector<16x128xf32>
      tpu.vector_store %arg9[%c0_21, %c0_22], %29 {strides = array<i32>} : memref<16x128xf32, #tpu.memory_space<vmem>>, vector<16x128xf32>,
    } else {
    }
    %c0 = arith.constant 0 : index
    %c0_1 = arith.constant 0 : index
    %3 = vector.load %arg2[%c0, %c0_1] : memref<16x32xf32, #tpu.memory_space<vmem>>, vector<16x32xf32>
    %c0_2 = arith.constant 0 : index
    %c0_3 = arith.constant 0 : index
    %4 = vector.load %arg4[%c0_2, %c0_3] : memref<32x128xf32, #tpu.memory_space<vmem>>, vector<32x128xf32>
    %cst = arith.constant dense<0.000000e+00> : vector<16x128xf32>
    %5 = tpu.matmul %3, %4, %cst {dimension_numbers = #tpu.dot_dimension_numbers<[1], [0], [0], [1], [0, 0, 1, 1], [], []>} : vector<16x32xf32>, vector<32x128xf32>, vector<16x128xf32> -> vector<16x128xf32>
    %c0_4 = arith.constant 0 : index
    %c0_5 = arith.constant 0 : index
    %6 = vector.load %arg3[%c0_4, %c0_5] : memref<16x1xf32, #tpu.memory_space<vmem>>, vector<16x1xf32>
    %c0_6 = arith.constant 0 : index
    %c0_7 = arith.constant 0 : index
    %7 = vector.load %arg5[%c0_6, %c0_7] : memref<1x128xf32, #tpu.memory_space<vmem>>, vector<1x128xf32>
    %8 = vector.broadcast %6 : vector<16x1xf32> to vector<16x128xf32>
    %9 = vector.broadcast %7 : vector<1x128xf32> to vector<16x128xf32>
    %10 = arith.addf %8, %9 : vector<16x128xf32>
    %11 = arith.addf %10, %5 : vector<16x128xf32>
    %12 = math.exp %11 : vector<16x128xf32>
    %13 = tpu.iota {dimensions = array<i32: 1>} : vector<128x128xi32>
    %c0_8 = arith.constant 0 : index
    %c0_9 = arith.constant 0 : index
    %14 = vector.load %arg6[%c0_8, %c0_9] : memref<128x1xi32, #tpu.memory_space<vmem>>, vector<128x1xi32>
    %15 = vector.broadcast %14 : vector<128x1xi32> to vector<128x128xi32>
    %16 = arith.cmpi eq, %13, %15 : vector<128x128xi32>
    %c0_10 = arith.constant 0 : index
    %c0_11 = arith.constant 0 : index
    %17 = vector.load %arg7[%c0_10, %c0_11] : memref<128x1xf32, #tpu.memory_space<vmem>>, vector<128x1xf32>
    %cst_12 = arith.constant 0.000000e+00 : f32
    %18 = vector.shape_cast %17 : vector<128x1xf32> to vector<128x1xf32>
    %19 = vector.broadcast %18 : vector<128x1xf32> to vector<128x128xf32>
    %20 = vector.broadcast %cst_12 : f32 to vector<128x128xf32>
    %21 = arith.select %16, %19, %20 : vector<128x128xi1>, vector<128x128xf32>
    %c0_13 = arith.constant 0 : index
    %c0_14 = arith.constant 0 : index
    %22 = vector.load %arg9[%c0_13, %c0_14] : memref<16x128xf32, #tpu.memory_space<vmem>>, vector<16x128xf32>
    %cst_15 = arith.constant dense<0.000000e+00> : vector<16x128xf32>
    %23 = tpu.matmul %12, %21, %cst_15 {dimension_numbers = #tpu.dot_dimension_numbers<[1], [0], [0], [1], [0, 0, 1, 1], [], []>} : vector<16x128xf32>, vector<128x128xf32>, vector<16x128xf32> -> vector<16x128xf32>
    %24 = arith.addf %22, %23 : vector<16x128xf32>
    %c0_16 = arith.constant 0 : index
    %c0_17 = arith.constant 0 : index
    %25 = vector.load %arg9[%c0_16, %c0_17] : memref<16x128xf32, #tpu.memory_space<vmem>>, vector<16x128xf32>
    tpu.vector_store %arg9[%c0_16, %c0_17], %24 {strides = array<i32>} : memref<16x128xf32, #tpu.memory_space<vmem>>, vector<16x128xf32>,
    %c0_i32_18 = arith.constant 0 : i32
    %26 = arith.cmpi eq, %arg1, %c0_i32_18 : i32
    %27 = arith.extui %26 : i1 to i32
    %c0_i32_19 = arith.constant 0 : i32
    %28 = arith.cmpi ne, %27, %c0_i32_19 : i32
    scf.if %28 {
      %c0_20 = arith.constant 0 : index
      %c0_21 = arith.constant 0 : index
      %29 = vector.load %arg9[%c0_20, %c0_21] : memref<16x128xf32, #tpu.memory_space<vmem>>, vector<16x128xf32>
      %cst_22 = arith.constant dense<0.000000e+00> : vector<16xf32>
      %30 = vector.multi_reduction <add>, %29, %cst_22 [1] : vector<16x128xf32> to vector<16xf32>
      %31 = vector.shape_cast %30 : vector<16xf32> to vector<16x1xf32>
      %cst_23 = arith.constant 1.000000e-10 : f32
      %32 = vector.broadcast %cst_23 : f32 to vector<16x1xf32>
      %33 = arith.maximumf %31, %32 : vector<16x1xf32>
      %34 = tpu.reciprocal %33 {approx = true} : vector<16x1xf32> -> vector<16x1xf32>
      %35 = arith.mulf %33, %34 : vector<16x1xf32>
      %cst_24 = arith.constant 2.000000e+00 : f32
      %36 = vector.broadcast %cst_24 : f32 to vector<16x1xf32>
      %37 = arith.subf %36, %35 : vector<16x1xf32>
      %38 = arith.mulf %34, %37 : vector<16x1xf32>
      %39 = arith.mulf %33, %38 : vector<16x1xf32>
      %cst_25 = arith.constant 2.000000e+00 : f32
      %40 = vector.broadcast %cst_25 : f32 to vector<16x1xf32>
      %41 = arith.subf %40, %39 : vector<16x1xf32>
      %42 = arith.mulf %38, %41 : vector<16x1xf32>
      %43 = vector.broadcast %42 : vector<16x1xf32> to vector<16x128xf32>
      %44 = arith.mulf %29, %43 : vector<16x128xf32>
      %c0_26 = arith.constant 0 : index
      %c0_27 = arith.constant 0 : index
      %45 = vector.load %arg8[%c0_26, %c0_27] : memref<16x128xf32, #tpu.memory_space<vmem>>, vector<16x128xf32>
      tpu.vector_store %arg8[%c0_26, %c0_27], %44 {strides = array<i32>} : memref<16x128xf32, #tpu.memory_space<vmem>>, vector<16x128xf32>,
    } else {
    }
    return
  }
  func.func @transform_0(%arg0: i32, %arg1: i32) -> (i32, i32) {
    %c0_i32 = arith.constant 0 : i32
    %c0_i32_0 = arith.constant 0 : i32
    return %arg0, %c0_i32 : i32, i32
  }
  func.func @transform_1(%arg0: i32, %arg1: i32) -> (i32, i32) {
    %c0_i32 = arith.constant 0 : i32
    %c0_i32_0 = arith.constant 0 : i32
    return %arg0, %c0_i32 : i32, i32
  }
  func.func @transform_2(%arg0: i32, %arg1: i32) -> (i32, i32) {
    %c0_i32 = arith.constant 0 : i32
    %c0_i32_0 = arith.constant 0 : i32
    return %c0_i32, %arg1 : i32, i32
  }
  func.func @transform_3(%arg0: i32, %arg1: i32) -> (i32, i32) {
    %c0_i32 = arith.constant 0 : i32
    %c0_i32_0 = arith.constant 0 : i32
    return %c0_i32, %arg1 : i32, i32
  }
  func.func @transform_4(%arg0: i32, %arg1: i32) -> (i32, i32) {
    %c0_i32 = arith.constant 0 : i32
    %c0_i32_0 = arith.constant 0 : i32
    return %arg1, %c0_i32 : i32, i32
  }
  func.func @transform_5(%arg0: i32, %arg1: i32) -> (i32, i32) {
    %c0_i32 = arith.constant 0 : i32
    %c0_i32_0 = arith.constant 0 : i32
    return %arg1, %c0_i32 : i32, i32
  }
  func.func @transform_6(%arg0: i32, %arg1: i32) -> (i32, i32) {
    %c0_i32 = arith.constant 0 : i32
    %c0_i32_0 = arith.constant 0 : i32
    return %arg0, %c0_i32 : i32, i32
  }
}

</mosaic_0001>

<llo_original>
// kernel: tpu_custom_call.1
$region0: #{tpu_custom_call.1}
  #allocation0 [shape = 'u32[]', space=smem, size = 0x4, offset = 0x4, fixed_abs, tag = 'smem constant byte address 0x4 - core index']
  #allocation1 [shape = 'u32[72,128]{1,0:T(1,128)}', space=vmem, size = 0x9000, scoped, tag = 'internal scratch']
  #allocation2 [shape = 'f32[16,128]{1,0:T(8,128)}', space=vmem, size = 0x2000, scoped, tag = 'scratch operand']
  %s0 = inlined_call_operand.vmem [shape: f32[16,32], index: 0, kind: input, shape index: {}]
  %s1 = inlined_call_operand.vmem [shape: f32[16,1], index: 1, kind: input, shape index: {}]
  %s2 = inlined_call_operand.vmem [shape: f32[32,128], index: 2, kind: input, shape index: {}]
  %s3 = inlined_call_operand.vmem [shape: f32[1,128], index: 3, kind: input, shape index: {}]
  %s4 = inlined_call_operand.vmem [shape: s32[128,1], index: 4, kind: input, shape index: {}]
  %s5 = inlined_call_operand.vmem [shape: f32[128,1], index: 5, kind: input, shape index: {}]
  %s6 = inlined_call_operand.hbm [shape: f32[16,128], index: 6, kind: output, shape index: {}]
  %s7 = sld [smem:[#allocation0]]
  $region42: #{tpu_custom_call.1} parent=0
    _
  %s9 = ssub.s32 1, %s7
  %s10 = scalar_select 0, %s9, %s7
  $region1: #{tpu_custom_call.1} parent=0
    #allocation3 [shape = 'u8[8192]{0}', space=vmem, size = 0x2000, scoped, tag = 'output window, operand 0, single buffered']
    #allocation4 [shape = 's32[1]{0}', space=sflag, size = 0x4, scoped, tag = 'scoped memory for tpu_custom_call.1']
    %11 = vsyncpa [#allocation4], 0
    // Predicated region
    $region2: #{tpu_custom_call.1} parent=1 // pred_check
      _
    $region3: #{tpu_custom_call.1} parent=1 // pred_check_branch
      %13 = sbr.rel (0) target = $region5
    $region4: #{tpu_custom_call.1} parent=1 // pred_region
      _
    $region5: #{tpu_custom_call.1} parent=1 // pred_fallthru
      _
    // Predicated region
    $region6: #{tpu_custom_call.1} parent=1 // pred_check
      _
    $region7: #{tpu_custom_call.1} parent=1 // pred_check_branch
      %15 = sbr.rel (0) target = $region9
    $region8: #{tpu_custom_call.1} parent=1 // pred_region
      _
    $region9: #{tpu_custom_call.1} parent=1 // pred_fallthru
      _
    // Predicated region
    $region10: #{tpu_custom_call.1} parent=1 // pred_check
      _
    $region11: #{tpu_custom_call.1} parent=1 // pred_check_branch
      %17 = sbr.rel (0) target = $region13
    $region12: #{tpu_custom_call.1} parent=1 // pred_region
      _
    $region13: #{tpu_custom_call.1} parent=1 // pred_fallthru
      _
    // Predicated region
    $region14: #{tpu_custom_call.1} parent=1 // pred_check
      _
    $region15: #{tpu_custom_call.1} parent=1 // pred_check_branch
      %19 = sbr.rel (0) target = $region17
    $region16: #{tpu_custom_call.1} parent=1 // pred_region
      _
    $region17: #{tpu_custom_call.1} parent=1 // pred_fallthru
      _
    // Predicated region
    $region18: #{tpu_custom_call.1} parent=1 // pred_check
      _
    $region19: #{tpu_custom_call.1} parent=1 // pred_check_branch
      %21 = sbr.rel (0) target = $region21
    $region20: #{tpu_custom_call.1} parent=1 // pred_region
      _
    $region21: #{tpu_custom_call.1} parent=1 // pred_fallthru
      _
    // Predicated region
    $region22: #{tpu_custom_call.1} parent=1 // pred_check
      _
    $region23: #{tpu_custom_call.1} parent=1 // pred_check_branch
      %23 = sbr.rel (0) target = $region25
    $region24: #{tpu_custom_call.1} parent=1 // pred_region
      _
    $region25: #{tpu_custom_call.1} parent=1 // pred_fallthru
      _
    %p24 = scmp.eq.s32.totalorder 0, 0
    // Predicated region
    $region26: #{tpu_custom_call.1} parent=1 // pred_check
      %p25 = pneg %p24
    $region27: #{tpu_custom_call.1} parent=1 // pred_check_branch
      %27 = sbr.rel (%p25) target = $region29
    $region28: #{tpu_custom_call.1} parent=1 // pred_region
      %28 = vst [vmem:[#allocation2] sm:$0xff] 0.0
      %29 = vst [vmem:[#allocation2 + $0x8] sm:$0xff] 0.0
    $region29: #{tpu_custom_call.1} parent=1 // pred_fallthru
      _
    %v30 = vld [vmem:[%s0] sm:$0xff]
    %v31 = vld [vmem:[%s0 + $0x8] sm:$0xff]
    %v32 = vld [vmem:[%s2] sm:$0xff]
    %v33 = vld [vmem:[%s2 + $0x8] sm:$0xff]
    %v34 = vld [vmem:[%s2 + $0x10] sm:$0xff]
    %v35 = vld [vmem:[%s2 + $0x18] sm:$0xff]
    %vm36 = vcmask 261120
    %v38 = vsel %vm36, %v30, 0
    %v41 = vsel %vm36, %v31, 0
    %43 = vmatpush.msra.mxu0 0.0
    %44 = vmatpush.msra.mxu0 0.0
    %45 = vmatpush.msra.mxu0 0.0
    %46 = vmatpush.msra.mxu0 0.0
    %47 = vmatpush.msra.mxu0 0.0
    %48 = vmatpush.msra.mxu0 0.0
    %49 = vmatpush.msra.mxu0 0.0
    %50 = vmatpush.msra.mxu0 0.0
    %51 = vmatpush.msra.mxu0 0.0
    %52 = vmatpush.msra.mxu0 0.0
    %53 = vmatpush.msra.mxu0 0.0
    %54 = vmatpush.msra.mxu0 0.0
    %55 = vmatpush.msra.mxu0 %v35
    %56 = vmatpush.msra.mxu0 %v34
    %57 = vmatpush.msra.mxu0 %v33
    %58 = vmatpush.msra.mxu0 %v32
    %59 = vmatmul.f32.gmra.mxu0 %v38
    %v60 = vpop.f32.mrf.mxu0
    %v61 = vadd.f32 0.0, %v60
    %62 = vmatmul.f32.gmra.mxu0 %v41
    %v63 = vpop.f32.mrf.mxu0
    %v64 = vadd.f32 0.0, %v63
    %65 = vdwg.mxu0
    %v66 = vld [vmem:[%s1] sm:$0xff]
    %v67 = vld [vmem:[%s1 + $0x8] sm:$0xff]
    %v68 = vld [vmem:[%s3] sm:$0x1]
    %70 = vset.pattern.permute.xlu0 0
    %71 = vperm.xlu0 %70, %v66
    %v72 = vpop.permute.xlu0 %71
    %75 = vset.pattern.permute.xlu0 0
    %76 = vperm.xlu0 %75, %v67
    %v77 = vpop.permute.xlu0 %76
    %v80 = vperm.slane %v68, 0
    %v82 = vadd.f32 %v72, %v80
    %v83 = vadd.f32 %v77, %v80
    %v84 = vadd.f32 %v82, %v61
    %v85 = vadd.f32 %v83, %v64
    %v86 = vmul.f32 %v84, 1.442695
    %v87 = vpow.pop %v86
    %v88 = vmul.f32 %v85, 1.442695
    %v89 = vpow.pop %v88
    %v90 = vlaneseq
    %v91 = vand.u32 %v90, 127
    %v92 = vld [vmem:[%s4] sm:$0xff]
    %v93 = vld [vmem:[%s4 + $0x8] sm:$0xff]
    %v94 = vld [vmem:[%s4 + $0x10] sm:$0xff]
    %v95 = vld [vmem:[%s4 + $0x18] sm:$0xff]
    %v96 = vld [vmem:[%s4 + $0x20] sm:$0xff]
    %v97 = vld [vmem:[%s4 + $0x28] sm:$0xff]
    %v98 = vld [vmem:[%s4 + $0x30] sm:$0xff]
    %v99 = vld [vmem:[%s4 + $0x38] sm:$0xff]
    %v100 = vld [vmem:[%s4 + $0x40] sm:$0xff]
    %v101 = vld [vmem:[%s4 + $0x48] sm:$0xff]
    %v102 = vld [vmem:[%s4 + $0x50] sm:$0xff]
    %v103 = vld [vmem:[%s4 + $0x58] sm:$0xff]
    %v104 = vld [vmem:[%s4 + $0x60] sm:$0xff]
    %v105 = vld [vmem:[%s4 + $0x68] sm:$0xff]
    %v106 = vld [vmem:[%s4 + $0x70] sm:$0xff]
    %v107 = vld [vmem:[%s4 + $0x78] sm:$0xff]
    %108 = vset.pattern.permute.xlu0 0
    %109 = vperm.xlu0 %108, %v92
    %v110 = vpop.permute.xlu0 %109
    %111 = vset.pattern.permute.xlu0 0
    %112 = vperm.xlu0 %111, %v93
    %v113 = vpop.permute.xlu0 %112
    %114 = vset.pattern.permute.xlu0 0
    %115 = vperm.xlu0 %114, %v94
    %v116 = vpop.permute.xlu0 %115
    %117 = vset.pattern.permute.xlu0 0
    %118 = vperm.xlu0 %117, %v95
    %v119 = vpop.permute.xlu0 %118
    %120 = vset.pattern.permute.xlu0 0
    %121 = vperm.xlu0 %120, %v96
    %v122 = vpop.permute.xlu0 %121
    %123 = vset.pattern.permute.xlu0 0
    %124 = vperm.xlu0 %123, %v97
    %v125 = vpop.permute.xlu0 %124
    %126 = vset.pattern.permute.xlu0 0
    %127 = vperm.xlu0 %126, %v98
    %v128 = vpop.permute.xlu0 %127
    %129 = vset.pattern.permute.xlu0 0
    %130 = vperm.xlu0 %129, %v99
    %v131 = vpop.permute.xlu0 %130
    %132 = vset.pattern.permute.xlu0 0
    %133 = vperm.xlu0 %132, %v100
    %v134 = vpop.permute.xlu0 %133
    %135 = vset.pattern.permute.xlu0 0
    %136 = vperm.xlu0 %135, %v101
    %v137 = vpop.permute.xlu0 %136
    %138 = vset.pattern.permute.xlu0 0
    %139 = vperm.xlu0 %138, %v102
    %v140 = vpop.permute.xlu0 %139
    %141 = vset.pattern.permute.xlu0 0
    %142 = vperm.xlu0 %141, %v103
    %v143 = vpop.permute.xlu0 %142
    %144 = vset.pattern.permute.xlu0 0
    %145 = vperm.xlu0 %144, %v104
    %v146 = vpop.permute.xlu0 %145
    %147 = vset.pattern.permute.xlu0 0
    %148 = vperm.xlu0 %147, %v105
    %v149 = vpop.permute.xlu0 %148
    %150 = vset.pattern.permute.xlu0 0
    %151 = vperm.xlu0 %150, %v106
    %v152 = vpop.permute.xlu0 %151
    %153 = vset.pattern.permute.xlu0 0
    %154 = vperm.xlu0 %153, %v107
    %v155 = vpop.permute.xlu0 %154
    %vm156 = vcmp.eq.s32.totalorder %v91, %v110
    %vm157 = vcmp.eq.s32.totalorder %v91, %v113
    %vm158 = vcmp.eq.s32.totalorder %v91, %v116
    %vm159 = vcmp.eq.s32.totalorder %v91, %v119
    %vm160 = vcmp.eq.s32.totalorder %v91, %v122
    %vm161 = vcmp.eq.s32.totalorder %v91, %v125
    %vm162 = vcmp.eq.s32.totalorder %v91, %v128
    %vm163 = vcmp.eq.s32.totalorder %v91, %v131
    %vm164 = vcmp.eq.s32.totalorder %v91, %v134
    %vm165 = vcmp.eq.s32.totalorder %v91, %v137
    %vm166 = vcmp.eq.s32.totalorder %v91, %v140
    %vm167 = vcmp.eq.s32.totalorder %v91, %v143
    %vm168 = vcmp.eq.s32.totalorder %v91, %v146
    %vm169 = vcmp.eq.s32.totalorder %v91, %v149
    %vm170 = vcmp.eq.s32.totalorder %v91, %v152
    %vm171 = vcmp.eq.s32.totalorder %v91, %v155
    %v172 = vld [vmem:[%s5] sm:$0xff]
    %v173 = vld [vmem:[%s5 + $0x8] sm:$0xff]
    %v174 = vld [vmem:[%s5 + $0x10] sm:$0xff]
    %v175 = vld [vmem:[%s5 + $0x18] sm:$0xff]
    %v176 = vld [vmem:[%s5 + $0x20] sm:$0xff]
    %v177 = vld [vmem:[%s5 + $0x28] sm:$0xff]
    %v178 = vld [vmem:[%s5 + $0x30] sm:$0xff]
    %v179 = vld [vmem:[%s5 + $0x38] sm:$0xff]
    %v180 = vld [vmem:[%s5 + $0x40] sm:$0xff]
    %v181 = vld [vmem:[%s5 + $0x48] sm:$0xff]
    %v182 = vld [vmem:[%s5 + $0x50] sm:$0xff]
    %v183 = vld [vmem:[%s5 + $0x58] sm:$0xff]
    %v184 = vld [vmem:[%s5 + $0x60] sm:$0xff]
    %v185 = vld [vmem:[%s5 + $0x68] sm:$0xff]
    %v186 = vld [vmem:[%s5 + $0x70] sm:$0xff]
    %v187 = vld [vmem:[%s5 + $0x78] sm:$0xff]
    %189 = vset.pattern.permute.xlu0 0
    %190 = vperm.xlu0 %189, %v172
    %v191 = vpop.permute.xlu0 %190
    %194 = vset.pattern.permute.xlu0 0
    %195 = vperm.xlu0 %194, %v173
    %v196 = vpop.permute.xlu0 %195
    %199 = vset.pattern.permute.xlu0 0
    %200 = vperm.xlu0 %199, %v174
    %v201 = vpop.permute.xlu0 %200
    %204 = vset.pattern.permute.xlu0 0
    %205 = vperm.xlu0 %204, %v175
    %v206 = vpop.permute.xlu0 %205
    %209 = vset.pattern.permute.xlu0 0
    %210 = vperm.xlu0 %209, %v176
    %v211 = vpop.permute.xlu0 %210
    %214 = vset.pattern.permute.xlu0 0
    %215 = vperm.xlu0 %214, %v177
    %v216 = vpop.permute.xlu0 %215
    %219 = vset.pattern.permute.xlu0 0
    %220 = vperm.xlu0 %219, %v178
    %v221 = vpop.permute.xlu0 %220
    %224 = vset.pattern.permute.xlu0 0
    %225 = vperm.xlu0 %224, %v179
    %v226 = vpop.permute.xlu0 %225
    %229 = vset.pattern.permute.xlu0 0
    %230 = vperm.xlu0 %229, %v180
    %v231 = vpop.permute.xlu0 %230
    %234 = vset.pattern.permute.xlu0 0
    %235 = vperm.xlu0 %234, %v181
    %v236 = vpop.permute.xlu0 %235
    %239 = vset.pattern.permute.xlu0 0
    %240 = vperm.xlu0 %239, %v182
    %v241 = vpop.permute.xlu0 %240
    %244 = vset.pattern.permute.xlu0 0
    %245 = vperm.xlu0 %244, %v183
    %v246 = vpop.permute.xlu0 %245
    %249 = vset.pattern.permute.xlu0 0
    %250 = vperm.xlu0 %249, %v184
    %v251 = vpop.permute.xlu0 %250
    %254 = vset.pattern.permute.xlu0 0
    %255 = vperm.xlu0 %254, %v185
    %v256 = vpop.permute.xlu0 %255
    %259 = vset.pattern.permute.xlu0 0
    %260 = vperm.xlu0 %259, %v186
    %v261 = vpop.permute.xlu0 %260
    %264 = vset.pattern.permute.xlu0 0
    %265 = vperm.xlu0 %264, %v187
    %v266 = vpop.permute.xlu0 %265
    %v268 = vsel %vm156, %v191, 0.0
    %v269 = vsel %vm157, %v196, 0.0
    %v270 = vsel %vm158, %v201, 0.0
    %v271 = vsel %vm159, %v206, 0.0
    %v272 = vsel %vm160, %v211, 0.0
    %v273 = vsel %vm161, %v216, 0.0
    %v274 = vsel %vm162, %v221, 0.0
    %v275 = vsel %vm163, %v226, 0.0
    %v276 = vsel %vm164, %v231, 0.0
    %v277 = vsel %vm165, %v236, 0.0
    %v278 = vsel %vm166, %v241, 0.0
    %v279 = vsel %vm167, %v246, 0.0
    %v280 = vsel %vm168, %v251, 0.0
    %v281 = vsel %vm169, %v256, 0.0
    %v282 = vsel %vm170, %v261, 0.0
    %v283 = vsel %vm171, %v266, 0.0
    %v284 = vld [vmem:[#allocation2] sm:$0xff]
    %v285 = vld [vmem:[#allocation2 + $0x8] sm:$0xff]
    %286 = vmatpush.msra.mxu0 %v283
    %287 = vmatpush.msra.mxu0 %v282
    %288 = vmatpush.msra.mxu0 %v281
    %289 = vmatpush.msra.mxu0 %v280
    %290 = vmatpush.msra.mxu0 %v279
    %291 = vmatpush.msra.mxu0 %v278
    %292 = vmatpush.msra.mxu0 %v277
    %293 = vmatpush.msra.mxu0 %v276
    %294 = vmatpush.msra.mxu0 %v275
    %295 = vmatpush.msra.mxu0 %v274
    %296 = vmatpush.msra.mxu0 %v273
    %297 = vmatpush.msra.mxu0 %v272
    %298 = vmatpush.msra.mxu0 %v271
    %299 = vmatpush.msra.mxu0 %v270
    %300 = vmatpush.msra.mxu0 %v269
    %301 = vmatpush.msra.mxu0 %v268
    %302 = vmatmul.f32.gmra.mxu0 %v87
    %v303 = vpop.f32.mrf.mxu0
    %v304 = vadd.f32 0.0, %v303
    %305 = vmatmul.f32.gmra.mxu0 %v89
    %v306 = vpop.f32.mrf.mxu0
    %v307 = vadd.f32 0.0, %v306
    %308 = vdwg.mxu0
    %v309 = vadd.f32 %v284, %v304
    %v310 = vadd.f32 %v285, %v307
    %311 = vst [vmem:[#allocation2] sm:$0xff] %v309
    %312 = vst [vmem:[#allocation2 + $0x8] sm:$0xff] %v310
    // Predicated region
    $region30: #{tpu_custom_call.1} parent=1 // pred_check
      %p313 = pneg %p24
    $region31: #{tpu_custom_call.1} parent=1 // pred_check_branch
      %315 = sbr.rel (%p313) target = $region33
    $region32: #{tpu_custom_call.1} parent=1 // pred_region
      %v316 = vld [vmem:[#allocation2] sm:$0xff]
      %v317 = vld [vmem:[#allocation2 + $0x8] sm:$0xff]
      %318 = vadd.xlane.f32.xlu0 %v316
      %v319 = vpop.xlane.xlu0 %318
      %320 = vadd.xlane.f32.xlu0 %v317
      %v321 = vpop.xlane.xlu0 %320
      %v322 = vmax.f32 %v319, 1e-10
      %v323 = vmax.f32 %v321, 1e-10
      %v324 = vrcp.pop %v322
      %v325 = vrcp.pop %v323
      %v326 = vmul.f32 %v322, %v324
      %v327 = vmul.f32 %v323, %v325
      %v328 = vsub.f32 2.0, %v326
      %v329 = vsub.f32 2.0, %v327
      %v330 = vmul.f32 %v324, %v328
      %v331 = vmul.f32 %v325, %v329
      %v332 = vmul.f32 %v322, %v330
      %v333 = vmul.f32 %v323, %v331
      %v334 = vsub.f32 2.0, %v332
      %v335 = vsub.f32 2.0, %v333
      %v336 = vmul.f32 %v330, %v334
      %v337 = vmul.f32 %v331, %v335
      %v338 = vmul.f32 %v316, %v336
      %v339 = vmul.f32 %v317, %v337
      %340 = vst [vmem:[#allocation3] sm:$0xff] %v338
      %341 = vst [vmem:[#allocation3 + $0x8] sm:$0xff] %v339
    $region33: #{tpu_custom_call.1} parent=1 // pred_fallthru
      _
    // Predicated region
    $region34: #{tpu_custom_call.1} parent=1 // pred_check
      _
    $region35: #{tpu_custom_call.1} parent=1 // pred_check_branch
      %343 = sbr.rel (0) target = $region37
    $region36: #{tpu_custom_call.1} parent=1 // pred_region
      %345 = vsyncadd [#allocation4], 0
      %s346 = sshll.u32 [#allocation3], 4
      %s347 = int_to_ptr.vmem [resolvable:$true] %s346
      %s348 = sshll.u32 %s6, 4
      %s349 = int_to_ptr.hbm [resolvable:$true] %s348
      %354 = dma.vmem_to_hbm [thread:$0]  %s347, 256, %s349, [#allocation4], 128, 128, 8
    $region37: #{tpu_custom_call.1} parent=1 // pred_fallthru
      _
    // Predicated region
    $region38: #{tpu_custom_call.1} parent=1 // pred_check
      _
    $region39: #{tpu_custom_call.1} parent=1 // pred_check_branch
      %356 = sbr.rel (0) target = $region41
    $region40: #{tpu_custom_call.1} parent=1 // pred_region
      %358 = dma.done [#allocation4], 256
    $region41: #{tpu_custom_call.1} parent=1 // pred_fallthru
      _
    %359 = vsyncpa [#allocation4], 1

</llo_original>
